<compile_context>
chip_gen: v5e
topology: v5e:2x2
jax: 0.10.0
libtpu: 0.0.40
codegen_flags: <defaults>
</compile_context>

<pallas_src>
import math

import jax
import jax.numpy as jnp
import numpy as np
from jax import lax
from jax.experimental import pallas as pl
from jax.experimental.pallas import tpu as pltpu


# --------------------------- Pallas kernel ----------------------------------


def tempolnet_main_kernel(x_ref, tem1_ref, w1_ref, b1_ref, w2_ref, b2_ref, out_ref):
    """One batch block:
       input + tem1 -> max over joints -> fused (1,3) conv (+folded BN1) + ReLU
       -> (Dropout: identity) -> 1x1 conv (+folded BN2) + ReLU."""
    b_blk, _, seg, dim = x_ref.shape
    m = b_blk * seg                                    # matmul M dimension

    # input + temporal embedding, AdaptiveMaxPool2d((1, seg)) == max over joints.
    z = x_ref[...] + tem1_ref[...][None, None, :, :]   # (b_blk, J, seg, dim)
    pooled = jnp.max(z, axis=1).reshape(m, dim)        # (b_blk*seg, dim), f32

    # Shifted taps for the (1,3) conv: XLU roll + per-batch boundary masking
    # (broadcasted_iota picks out the first/last time step of every batch row group,
    #  reproducing the zero padding without materializing concatenated copies).
    row = lax.broadcasted_iota(jnp.int32, (m, dim), 0)
    prev = jnp.where(row % seg == 0, 0.0, pltpu.roll(pooled, shift=1, axis=0))
    nxt = jnp.where(row % seg == seg - 1, 0.0, pltpu.roll(pooled, shift=m - 1, axis=0))

    # Fused 1x3 conv as ONE K=3*dim MXU matmul; BN1 is pre-folded into w1/b1.
    # Operands bf16, accumulation f32.
    taps = jnp.concatenate([prev, pooled, nxt], axis=-1).astype(jnp.bfloat16)
    h1 = jnp.maximum(
        jnp.dot(taps, w1_ref[...], preferred_element_type=jnp.float32) + b1_ref[...],
        0.0)                                           # (m, dim), f32

    # 1x1 conv (BN2 pre-folded) + ReLU.  Dropout2d is identity in eval mode.
    y2 = jnp.dot(h1.astype(jnp.bfloat16), w2_ref[...],
                 preferred_element_type=jnp.float32) + b2_ref[...]
    out_ref[...] = jnp.maximum(y2, 0.0)                # lane-dense (m, 2*dim) store


# --------------------------- Wrapper ----------------------------------------


def _pick_batch_block(B, seg, max_blk=32):
    """Largest divisor of B <= min(max_blk, B//2) with (b_blk*seg) % 8 == 0.
    Keeps >= 2 grid steps when B >= 2 (v7x has 2 TensorCores) while batching the
    MXU M dimension; falls back to a single full-batch block (always legal)."""
    cap = max(1, min(max_blk, B // 2)) if B >= 2 else 1
    for cand in range(cap, 0, -1):
        if B % cand == 0 and (cand * seg) % 8 == 0:
            return cand
    return B


def tempolnet_forward(x_in, params, *, max_batch_block=32, x_channels_last=False):
    """x_in: NCHW (B, dim, J, seg), or (B, J, seg, dim) if x_channels_last=True.
    Returns NCHW (B, 2*dim, 1, seg)."""
    if x_channels_last:
        B, J, seg, dim = x_in.shape
        x = x_in.astype(jnp.float32)
    else:
        B, dim, J, seg = x_in.shape
        # TODO(synk): ideally the producer emits channels-last so this extra HBM
        # roundtrip of x disappears (pass x_channels_last=True).
        x = jnp.transpose(x_in, (0, 2, 3, 1)).astype(jnp.float32)   # (B, J, seg, dim)
    dim2 = 2 * dim

    # ---- embed(norm=False) on the one-hot temporal code, folded at trace time ----
    # eye(seg) @ w1.T == w1.T, so tem1 = relu(relu(w1.T + b1) @ w2.T + b2).
    h = jnp.maximum(params["w1"].T + params["b1"][None, :], 0.0)          # (seg, 64)
    tem1 = jnp.maximum(h @ params["w2"].T + params["b2"][None, :], 0.0)   # (seg, dim)
    tem1 = tem1.astype(jnp.float32)

    # ---- fold BN into the convs; fuse the three 1x3 taps into one (3*dim, dim) ----
    w1 = (jnp.transpose(params["wc1"], (2, 1, 0)).reshape(3 * dim, dim)
          * params["s1"][None, :]).astype(jnp.bfloat16)                   # (3*dim, dim)
    b1 = (params["bc1"] * params["s1"] + params["t1"])[None, :].astype(jnp.float32)
    w2 = (params["wc2"] * params["s2"][:, None]).T.astype(jnp.bfloat16)   # (dim, 2*dim)
    b2 = (params["bc2"] * params["s2"] + params["t2"])[None, :].astype(jnp.float32)

    # ---- batch blocking: fill the MXU M dimension, amortize grid-step overhead ----
    b_blk = _pick_batch_block(B, seg, max_batch_block)
    n_blk = B // b_blk
    # VMEM per step: x block = b_blk*J*seg*dim*4 B (x2 double-buffered) + weights;
    # at b_blk<=32 this is well under the 32 MiB scoped default on v5e/v6e/v7x.

    out_flat = pl.pallas_call(
        tempolnet_main_kernel,
        out_shape=jax.ShapeDtypeStruct((B * seg, dim2), jnp.float32),
        grid=(n_blk,),
        in_specs=[
            pl.BlockSpec((b_blk, J, seg, dim), lambda b: (b, 0, 0, 0)),
            pl.BlockSpec((seg, dim), lambda b: (0, 0)),
            pl.BlockSpec((3 * dim, dim), lambda b: (0, 0)),
            pl.BlockSpec((1, dim), lambda b: (0, 0)),
            pl.BlockSpec((dim, dim2), lambda b: (0, 0)),
            pl.BlockSpec((1, dim2), lambda b: (0, 0)),
        ],
        out_specs=pl.BlockSpec((b_blk * seg, dim2), lambda b: (b, 0)),
        compiler_params=pltpu.CompilerParams(dimension_semantics=("parallel",)),
    )(x, tem1, w1, b1, w2, b2)

    # lane-dense (B*seg, 2*dim) slab  ->  PyTorch NCHW (B, 2*dim, 1, seg)
    return jnp.transpose(out_flat.reshape(B, seg, dim2), (0, 2, 1))[:, :, None, :]


# --------------------------- Parameters -------------------------------------


def init_params(key, seg, dim):
    """Deterministic init matching TempolNet.__init__ (He-normal conv weights,
    default uniform conv biases, default BatchNorm affine/running stats)."""
    ks = jax.random.split(key, 8)

    def he(k, shape, kh, kw, out_ch):
        return math.sqrt(2.0 / (kh * kw * out_ch)) * jax.random.normal(
            k, shape, jnp.float32)

    def conv_bias(k, out_ch, fan_in):
        bound = 1.0 / math.sqrt(fan_in)
        return jax.random.uniform(k, (out_ch,), jnp.float32, -bound, bound)

    p = {}
    # embed(norm=False): cnn1x1(seg, 64) ; cnn1x1(64, dim)
    p["w1"] = he(ks[0], (64, seg), 1, 1, 64)             # PT (64, seg, 1, 1)
    p["b1"] = conv_bias(ks[1], 64, seg)
    p["w2"] = he(ks[2], (dim, 64), 1, 1, dim)            # PT (dim, 64, 1, 1)
    p["b2"] = conv_bias(ks[3], dim, 64)
    # local.cnn1: Conv2d(dim, dim, kernel=(1,3), padding=(0,1), bias=True)
    p["wc1"] = he(ks[4], (dim, dim, 3), 1, 3, dim)       # PT (dim, dim, 1, 3)
    p["bc1"] = conv_bias(ks[5], dim, dim * 3)
    # local.cnn2: Conv2d(dim, 2*dim, kernel=1, bias=True)
    p["wc2"] = he(ks[6], (2 * dim, dim), 1, 1, 2 * dim)  # PT (2*dim, dim, 1, 1)
    p["bc2"] = conv_bias(ks[7], 2 * dim, dim)
    # BatchNorm2d (inference): scale = gamma/sqrt(var+eps), shift = beta - mean*scale
    eps = 1e-5
    p["s1"] = jnp.full((dim,), 1.0 / math.sqrt(1.0 + eps), jnp.float32)
    p["t1"] = jnp.zeros((dim,), jnp.float32)
    p["s2"] = jnp.full((2 * dim,), 1.0 / math.sqrt(1.0 + eps), jnp.float32)
    p["t2"] = jnp.zeros((2 * dim,), jnp.float32)
    return p


# --------------------------- Pure-JAX reference ------------------------------


def reference_forward(x_nchw, params):
    B, dim, J, seg = x_nchw.shape
    tem = jnp.eye(seg, dtype=jnp.float32)             # tem[0, c, 0, w] = (c == w)
    h = jnp.einsum("oi,iw->ow", params["w1"], tem) + params["b1"][:, None]
    h = jnp.maximum(h, 0.0)
    t = jnp.einsum("oi,iw->ow", params["w2"], h) + params["b2"][:, None]
    tem1 = jnp.maximum(t, 0.0)                        # (dim, seg)
    z = x_nchw + tem1[None, :, None, :]
    pooled = jnp.max(z, axis=2)                       # (B, dim, seg)
    xp = jnp.pad(pooled, ((0, 0), (0, 0), (1, 1)))
    xs = jnp.stack([xp[:, :, k:k + seg] for k in range(3)], axis=0)
    y1 = jnp.einsum("oik,kbit->bot", params["wc1"], xs) + params["bc1"][None, :, None]
    h1 = jnp.maximum(y1 * params["s1"][None, :, None] + params["t1"][None, :, None], 0.0)
    y2 = jnp.einsum("oi,bit->bot", params["wc2"], h1) + params["bc2"][None, :, None]
    out = jnp.maximum(y2 * params["s2"][None, :, None] + params["t2"][None, :, None], 0.0)
    return out[:, :, None, :]                         # (B, 2*dim, 1, seg)


# --------------------------- Main --------------------------------------------


if __name__ == "__main__":
    # Small shapes (module default dim=256).  dim=64 keeps 2*dim = 128 so the output
    # stays lane-dense; B=8 exercises batch blocking (b_blk=4, grid=(2,)).
    B, dim, J, seg = 8, 64, 5, 8
    key = jax.random.PRNGKey(0)
    kx, kp = jax.random.split(key)

    x = jax.random.normal(kx, (B, dim, J, seg), jnp.float32)   # NCHW like PyTorch
    params = init_params(kp, seg, dim)

    out = jax.block_until_ready(tempolnet_forward(x, params))
    assert out.shape == (B, 2 * dim, 1, seg)

    ref = reference_forward(x, params)
    # bf16 MXU operands (f32 accumulation) => slightly looser tolerance than pure f32.
    np.testing.assert_allclose(np.asarray(out), np.asarray(ref), rtol=2e-2, atol=5e-2)
    print("KERNEL_OK")
</pallas_src>

<mosaic_0001>
module attributes {stable_mosaic.version = 11 : i64} {
  func.func @tempolnet_main_kernel(%arg0: i32, %arg1: memref<4x5x8x64xf32, #tpu.memory_space<vmem>>, %arg2: memref<8x64xf32, #tpu.memory_space<vmem>>, %arg3: memref<192x64xbf16, #tpu.memory_space<vmem>>, %arg4: memref<1x64xf32, #tpu.memory_space<vmem>>, %arg5: memref<64x128xbf16, #tpu.memory_space<vmem>>, %arg6: memref<1x128xf32, #tpu.memory_space<vmem>>, %arg7: memref<32x128xf32, #tpu.memory_space<vmem>>) attributes {dimension_semantics = [#tpu.dimension_semantics<parallel>], iteration_bounds = array<i64: 2>, scalar_prefetch = 0 : i64, scratch_operands = 0 : i64, tpu.core_type = #tpu.core_type<tc>, window_params = [{transform_indices = @transform_0, window_bounds = array<i64: 4, 5, 8, 64>}, {pipeline_mode = #tpu.pipeline_mode<synchronous>, transform_indices = @transform_1, window_bounds = array<i64: 8, 64>}, {pipeline_mode = #tpu.pipeline_mode<synchronous>, transform_indices = @transform_2, window_bounds = array<i64: 192, 64>}, {pipeline_mode = #tpu.pipeline_mode<synchronous>, transform_indices = @transform_3, window_bounds = array<i64: 1, 64>}, {pipeline_mode = #tpu.pipeline_mode<synchronous>, transform_indices = @transform_4, window_bounds = array<i64: 64, 128>}, {pipeline_mode = #tpu.pipeline_mode<synchronous>, transform_indices = @transform_5, window_bounds = array<i64: 1, 128>}, {transform_indices = @transform_6, window_bounds = array<i64: 32, 128>}]} {
    %c0 = arith.constant 0 : index
    %c0_0 = arith.constant 0 : index
    %c0_1 = arith.constant 0 : index
    %c0_2 = arith.constant 0 : index
    %0 = vector.load %arg1[%c0, %c0_0, %c0_1, %c0_2] : memref<4x5x8x64xf32, #tpu.memory_space<vmem>>, vector<4x5x8x64xf32>
    %c0_3 = arith.constant 0 : index
    %c0_4 = arith.constant 0 : index
    %1 = vector.load %arg2[%c0_3, %c0_4] : memref<8x64xf32, #tpu.memory_space<vmem>>, vector<8x64xf32>
    %2 = vector.shape_cast %1 : vector<8x64xf32> to vector<1x1x8x64xf32>
    %3 = vector.broadcast %2 : vector<1x1x8x64xf32> to vector<4x5x8x64xf32>
    %4 = arith.addf %0, %3 : vector<4x5x8x64xf32>
    %cst = arith.constant dense<0xFF800000> : vector<4x8x64xf32>
    %5 = vector.multi_reduction <maximumf>, %4, %cst [1] : vector<4x5x8x64xf32> to vector<4x8x64xf32>
    %6 = vector.shape_cast %5 : vector<4x8x64xf32> to vector<32x64xf32>
    %7 = tpu.iota {dimensions = array<i32: 0>} : vector<32x64xi32>
    %c8_i32 = arith.constant 8 : i32
    %c0_i32 = arith.constant 0 : i32
    %8 = arith.cmpi eq, %c8_i32, %c0_i32 : i32
    %c1_i32 = arith.constant 1 : i32
    %9 = arith.select %8, %c1_i32, %c8_i32 : i32
    %10 = vector.broadcast %9 : i32 to vector<32x64xi32>
    %11 = arith.remsi %7, %10 : vector<32x64xi32>
    %c0_i32_5 = arith.constant 0 : i32
    %12 = vector.broadcast %c0_i32_5 : i32 to vector<32x64xi32>
    %13 = arith.cmpi ne, %11, %12 : vector<32x64xi32>
    %c0_i32_6 = arith.constant 0 : i32
    %14 = vector.broadcast %c0_i32_6 : i32 to vector<32x64xi32>
    %15 = arith.cmpi slt, %11, %14 : vector<32x64xi32>
    %c0_i32_7 = arith.constant 0 : i32
    %16 = arith.cmpi slt, %9, %c0_i32_7 : i32
    %17 = vector.broadcast %16 : i1 to vector<32x64xi1>
    %18 = vector.broadcast %17 : vector<32x64xi1> to vector<32x64xi1>
    %19 = arith.xori %15, %18 : vector<32x64xi1>
    %20 = arith.andi %19, %13 : vector<32x64xi1>
    %21 = vector.broadcast %9 : i32 to vector<32x64xi32>
    %22 = arith.addi %11, %21 : vector<32x64xi32>
    %23 = arith.select %20, %22, %11 : vector<32x64xi1>, vector<32x64xi32>
    %c0_i32_8 = arith.constant 0 : i32
    %24 = vector.broadcast %c0_i32_8 : i32 to vector<32x64xi32>
    %25 = arith.cmpi eq, %23, %24 : vector<32x64xi32>
    %c1_i32_9 = arith.constant 1 : i32
    %26 = tpu.dynamic_rotate %6 by %c1_i32_9 dim 0 : vector<32x64xf32>, i32 -> vector<32x64xf32>
    %cst_10 = arith.constant 0.000000e+00 : f32
    %27 = vector.broadcast %cst_10 : f32 to vector<32x64xf32>
    %28 = arith.select %25, %27, %26 : vector<32x64xi1>, vector<32x64xf32>
    %c8_i32_11 = arith.constant 8 : i32
    %c0_i32_12 = arith.constant 0 : i32
    %29 = arith.cmpi eq, %c8_i32_11, %c0_i32_12 : i32
    %c1_i32_13 = arith.constant 1 : i32
    %30 = arith.select %29, %c1_i32_13, %c8_i32_11 : i32
    %31 = vector.broadcast %30 : i32 to vector<32x64xi32>
    %32 = arith.remsi %7, %31 : vector<32x64xi32>
    %c0_i32_14 = arith.constant 0 : i32
    %33 = vector.broadcast %c0_i32_14 : i32 to vector<32x64xi32>
    %34 = arith.cmpi ne, %32, %33 : vector<32x64xi32>
    %c0_i32_15 = arith.constant 0 : i32
    %35 = vector.broadcast %c0_i32_15 : i32 to vector<32x64xi32>
    %36 = arith.cmpi slt, %32, %35 : vector<32x64xi32>
    %c0_i32_16 = arith.constant 0 : i32
    %37 = arith.cmpi slt, %30, %c0_i32_16 : i32
    %38 = vector.broadcast %37 : i1 to vector<32x64xi1>
    %39 = vector.broadcast %38 : vector<32x64xi1> to vector<32x64xi1>
    %40 = arith.xori %36, %39 : vector<32x64xi1>
    %41 = arith.andi %40, %34 : vector<32x64xi1>
    %42 = vector.broadcast %30 : i32 to vector<32x64xi32>
    %43 = arith.addi %32, %42 : vector<32x64xi32>
    %44 = arith.select %41, %43, %32 : vector<32x64xi1>, vector<32x64xi32>
    %c7_i32 = arith.constant 7 : i32
    %45 = vector.broadcast %c7_i32 : i32 to vector<32x64xi32>
    %46 = arith.cmpi eq, %44, %45 : vector<32x64xi32>
    %c31_i32 = arith.constant 31 : i32
    %47 = tpu.dynamic_rotate %6 by %c31_i32 dim 0 : vector<32x64xf32>, i32 -> vector<32x64xf32>
    %cst_17 = arith.constant 0.000000e+00 : f32
    %48 = vector.broadcast %cst_17 : f32 to vector<32x64xf32>
    %49 = arith.select %46, %48, %47 : vector<32x64xi1>, vector<32x64xf32>
    %50 = tpu.concatenate %28, %6, %49 in 1 : vector<32x64xf32>, vector<32x64xf32>, vector<32x64xf32> -> vector<32x192xf32>
    %51 = arith.truncf %50 : vector<32x192xf32> to vector<32x192xbf16>
    %c0_18 = arith.constant 0 : index
    %c0_19 = arith.constant 0 : index
    %52 = vector.load %arg3[%c0_18, %c0_19] : memref<192x64xbf16, #tpu.memory_space<vmem>>, vector<192x64xbf16>
    %cst_20 = arith.constant dense<0.000000e+00> : vector<32x64xf32>
    %53 = tpu.matmul %51, %52, %cst_20 {dimension_numbers = #tpu.dot_dimension_numbers<[1], [0], [0], [1], [0, 0, 1, 1], [], []>} : vector<32x192xbf16>, vector<192x64xbf16>, vector<32x64xf32> -> vector<32x64xf32>
    %c0_21 = arith.constant 0 : index
    %c0_22 = arith.constant 0 : index
    %54 = vector.load %arg4[%c0_21, %c0_22] : memref<1x64xf32, #tpu.memory_space<vmem>>, vector<1x64xf32>
    %55 = vector.broadcast %54 : vector<1x64xf32> to vector<32x64xf32>
    %56 = arith.addf %53, %55 : vector<32x64xf32>
    %cst_23 = arith.constant 0.000000e+00 : f32
    %57 = vector.broadcast %cst_23 : f32 to vector<32x64xf32>
    %58 = arith.maximumf %56, %57 : vector<32x64xf32>
    %59 = arith.truncf %58 : vector<32x64xf32> to vector<32x64xbf16>
    %c0_24 = arith.constant 0 : index
    %c0_25 = arith.constant 0 : index
    %60 = vector.load %arg5[%c0_24, %c0_25] : memref<64x128xbf16, #tpu.memory_space<vmem>>, vector<64x128xbf16>
    %cst_26 = arith.constant dense<0.000000e+00> : vector<32x128xf32>
    %61 = tpu.matmul %59, %60, %cst_26 {dimension_numbers = #tpu.dot_dimension_numbers<[1], [0], [0], [1], [0, 0, 1, 1], [], []>} : vector<32x64xbf16>, vector<64x128xbf16>, vector<32x128xf32> -> vector<32x128xf32>
    %c0_27 = arith.constant 0 : index
    %c0_28 = arith.constant 0 : index
    %62 = vector.load %arg6[%c0_27, %c0_28] : memref<1x128xf32, #tpu.memory_space<vmem>>, vector<1x128xf32>
    %63 = vector.broadcast %62 : vector<1x128xf32> to vector<32x128xf32>
    %64 = arith.addf %61, %63 : vector<32x128xf32>
    %cst_29 = arith.constant 0.000000e+00 : f32
    %65 = vector.broadcast %cst_29 : f32 to vector<32x128xf32>
    %66 = arith.maximumf %64, %65 : vector<32x128xf32>
    %c0_30 = arith.constant 0 : index
    %c0_31 = arith.constant 0 : index
    %67 = vector.load %arg7[%c0_30, %c0_31] : memref<32x128xf32, #tpu.memory_space<vmem>>, vector<32x128xf32>
    tpu.vector_store %arg7[%c0_30, %c0_31], %66 {strides = array<i32>} : memref<32x128xf32, #tpu.memory_space<vmem>>, vector<32x128xf32>,
    return
  }
  func.func @transform_0(%arg0: i32) -> (i32, i32, i32, i32) {
    %c0_i32 = arith.constant 0 : i32
    %c0_i32_0 = arith.constant 0 : i32
    %c0_i32_1 = arith.constant 0 : i32
    %c0_i32_2 = arith.constant 0 : i32
    return %arg0, %c0_i32, %c0_i32_0, %c0_i32_1 : i32, i32, i32, i32
  }
  func.func @transform_1(%arg0: i32) -> (i32, i32) {
    %c0_i32 = arith.constant 0 : i32
    %c0_i32_0 = arith.constant 0 : i32
    %c0_i32_1 = arith.constant 0 : i32
    return %c0_i32, %c0_i32_0 : i32, i32
  }
  func.func @transform_2(%arg0: i32) -> (i32, i32) {
    %c0_i32 = arith.constant 0 : i32
    %c0_i32_0 = arith.constant 0 : i32
    %c0_i32_1 = arith.constant 0 : i32
    return %c0_i32, %c0_i32_0 : i32, i32
  }
  func.func @transform_3(%arg0: i32) -> (i32, i32) {
    %c0_i32 = arith.constant 0 : i32
    %c0_i32_0 = arith.constant 0 : i32
    %c0_i32_1 = arith.constant 0 : i32
    return %c0_i32, %c0_i32_0 : i32, i32
  }
  func.func @transform_4(%arg0: i32) -> (i32, i32) {
    %c0_i32 = arith.constant 0 : i32
    %c0_i32_0 = arith.constant 0 : i32
    %c0_i32_1 = arith.constant 0 : i32
    return %c0_i32, %c0_i32_0 : i32, i32
  }
  func.func @transform_5(%arg0: i32) -> (i32, i32) {
    %c0_i32 = arith.constant 0 : i32
    %c0_i32_0 = arith.constant 0 : i32
    %c0_i32_1 = arith.constant 0 : i32
    return %c0_i32, %c0_i32_0 : i32, i32
  }
  func.func @transform_6(%arg0: i32) -> (i32, i32) {
    %c0_i32 = arith.constant 0 : i32
    %c0_i32_0 = arith.constant 0 : i32
    return %arg0, %c0_i32 : i32, i32
  }
}

</mosaic_0001>

<llo_original>
// kernel: tpu_custom_call.1
$region0: #{tpu_custom_call.1}
  #allocation0 [shape = 'u32[]', space=smem, size = 0x4, offset = 0x4, fixed_abs, tag = 'smem constant byte address 0x4 - core index']
  #allocation1 [shape = 'u32[72,128]{1,0:T(1,128)}', space=vmem, size = 0x9000, scoped, tag = 'internal scratch']
  %s0 = inlined_call_operand.hbm [shape: f32[8,5,8,64], index: 0, kind: input, shape index: {}]
  %s1 = inlined_call_operand.vmem [shape: f32[8,64], index: 1, kind: input, shape index: {}]
  %s2 = inlined_call_operand.vmem [shape: bf16[192,64], index: 2, kind: input, shape index: {}]
  %s3 = inlined_call_operand.vmem [shape: f32[1,64], index: 3, kind: input, shape index: {}]
  %s4 = inlined_call_operand.vmem [shape: bf16[64,128], index: 4, kind: input, shape index: {}]
  %s5 = inlined_call_operand.vmem [shape: f32[1,128], index: 5, kind: input, shape index: {}]
  %s6 = inlined_call_operand.hbm [shape: f32[64,128], index: 6, kind: output, shape index: {}]
  %s7 = sld [smem:[#allocation0]]
  $region61: #{tpu_custom_call.1} parent=0
    _
  %s9 = ssub.s32 1, %s7
  %s10 = scalar_select 0, %s9, %s7
  $region1: #{tpu_custom_call.1} parent=0
    #allocation2 [shape = 'u8[163840]{0}', space=vmem, size = 0x28000, scoped, tag = 'input window, operand 0']
    #allocation3 [shape = 's32[2]{0}', space=sflag, size = 0x8, scoped, tag = 'scoped memory for tpu_custom_call.1']
    #allocation4 [shape = 's32[2]{0}', space=sflag, size = 0x8, scoped, tag = 'scoped memory for tpu_custom_call.1']
    #allocation5 [shape = 'u8[32768]{0}', space=vmem, size = 0x8000, scoped, tag = 'output window, operand 0']
    %11 = vsyncpa [#allocation3], 0
    %s12 = scalar_lea.sflag [#allocation3], 1
    %13 = vsyncpa %s12, 0
    %14 = vsyncpa [#allocation4], 0
    %s15 = scalar_lea.sflag [#allocation4], 1
    %16 = vsyncpa %s15, 0
    loop: start=0, step=1, limit=4
    $region2: #{tpu_custom_call.1} parent=1 // loop_pre_header
      _
    $region3: #{tpu_custom_call.1} parent=1 // loop_header
      %s18 = sphi 0, %s22
      %p19 = scmp.ge.s32.totalorder %s18, 4
      %s28 = sphi 0, %s30
      %s31 = sphi 0, %s28
      %s32 = sphi 0, %s31
      %s48 = sphi 0, %s32
      %s52 = sphi 0, %s52
      %s54 = sphi 0, %s52
      %s55 = sphi 0, %s54
      %s69 = sphi 0, %s55
      %s73 = sphi 0, %s73
      %s75 = sphi 0, %s73
      %s76 = sphi 0, %s75
      %s90 = sphi 0, %s76
      %s94 = sphi 0, %s94
      %s96 = sphi 0, %s94
      %s97 = sphi 0, %s96
      %s111 = sphi 0, %s97
      %s115 = sphi 0, %s115
      %s117 = sphi 0, %s115
      %s118 = sphi 0, %s117
      %s132 = sphi 0, %s118
      %s136 = sphi 0, %s136
      %s138 = sphi 0, %s136
      %s139 = sphi 0, %s138
      %s153 = sphi 0, %s139
      %s159 = sphi 0, %s161
      %s162 = sphi 0, %s159
      %s163 = sphi 0, %s162
      %s179 = sphi 0, %s163
    $region4: #{tpu_custom_call.1} parent=1 // loop_header_branch
      %21 = sbr.rel (%p19) target = $region8
    $region5: #{tpu_custom_call.1} parent=1 // loop_body
      %s23 = ssub.s32 %s18, 1
      %s24 = ssub.s32 %s18, 2
      %s25 = sadd.s32 %s18, 1
      %s26 = ssub.s32 %s18, %s25
      %p27 = scmp.eq.s32.totalorder %s26, 0
      %s29 = sadd.s32 %s28, 1
      %s30 = scalar_select %p27, %s28, %s29
      %p33 = pneg %p27
      %p34 = scmp.eq.s32.totalorder %s18, 1
      %p35 = por %p33, %p34
      %p36 = scmp.ne.s32.totalorder %s28, %s31
      %p37 = scmp.eq.s32.totalorder %s18, 0
      %p38 = por %p36, %p37
      %p39 = scmp.ne.s32.totalorder %s28, %s31
      %p40 = scmp.eq.s32.totalorder %s23, 1
      %p41 = por %p39, %p40
      %p42 = scmp.ne.s32.totalorder %s31, %s32
      %p43 = scmp.eq.s32.totalorder %s23, 0
      %p44 = por %p42, %p43
      %p45 = scmp.ne.s32.totalorder %s31, %s32
      %p46 = scmp.eq.s32.totalorder %s24, 1
      %p47 = por %p45, %p46
      %p49 = scmp.ne.s32.totalorder %s32, %s48
      %p50 = scmp.eq.s32.totalorder %s24, 0
      %p51 = por %p49, %p50
      %s53 = sadd.s32 %s52, 1
      %p56 = scmp.eq.s32.totalorder %s18, 1
      %p57 = scmp.ne.s32.totalorder %s52, %s54
      %p58 = scmp.eq.s32.totalorder %s18, 0
      %p59 = por %p57, %p58
      %p60 = scmp.ne.s32.totalorder %s52, %s54
      %p61 = scmp.eq.s32.totalorder %s23, 1
      %p62 = por %p60, %p61
      %p63 = scmp.ne.s32.totalorder %s54, %s55
      %p64 = scmp.eq.s32.totalorder %s23, 0
      %p65 = por %p63, %p64
      %p66 = scmp.ne.s32.totalorder %s54, %s55
      %p67 = scmp.eq.s32.totalorder %s24, 1
      %p68 = por %p66, %p67
      %p70 = scmp.ne.s32.totalorder %s55, %s69
      %p71 = scmp.eq.s32.totalorder %s24, 0
      %p72 = por %p70, %p71
      %s74 = sadd.s32 %s73, 1
      %p77 = scmp.eq.s32.totalorder %s18, 1
      %p78 = scmp.ne.s32.totalorder %s73, %s75
      %p79 = scmp.eq.s32.totalorder %s18, 0
      %p80 = por %p78, %p79
      %p81 = scmp.ne.s32.totalorder %s73, %s75
      %p82 = scmp.eq.s32.totalorder %s23, 1
      %p83 = por %p81, %p82
      %p84 = scmp.ne.s32.totalorder %s75, %s76
      %p85 = scmp.eq.s32.totalorder %s23, 0
      %p86 = por %p84, %p85
      %p87 = scmp.ne.s32.totalorder %s75, %s76
      %p88 = scmp.eq.s32.totalorder %s24, 1
      %p89 = por %p87, %p88
      %p91 = scmp.ne.s32.totalorder %s76, %s90
      %p92 = scmp.eq.s32.totalorder %s24, 0
      %p93 = por %p91, %p92
      %s95 = sadd.s32 %s94, 1
      %p98 = scmp.eq.s32.totalorder %s18, 1
      %p99 = scmp.ne.s32.totalorder %s94, %s96
      %p100 = scmp.eq.s32.totalorder %s18, 0
      %p101 = por %p99, %p100
      %p102 = scmp.ne.s32.totalorder %s94, %s96
      %p103 = scmp.eq.s32.totalorder %s23, 1
      %p104 = por %p102, %p103
      %p105 = scmp.ne.s32.totalorder %s96, %s97
      %p106 = scmp.eq.s32.totalorder %s23, 0
      %p107 = por %p105, %p106
      %p108 = scmp.ne.s32.totalorder %s96, %s97
      %p109 = scmp.eq.s32.totalorder %s24, 1
      %p110 = por %p108, %p109
      %p112 = scmp.ne.s32.totalorder %s97, %s111
      %p113 = scmp.eq.s32.totalorder %s24, 0
      %p114 = por %p112, %p113
      %s116 = sadd.s32 %s115, 1
      %p119 = scmp.eq.s32.totalorder %s18, 1
      %p120 = scmp.ne.s32.totalorder %s115, %s117
      %p121 = scmp.eq.s32.totalorder %s18, 0
      %p122 = por %p120, %p121
      %p123 = scmp.ne.s32.totalorder %s115, %s117
      %p124 = scmp.eq.s32.totalorder %s23, 1
      %p125 = por %p123, %p124
      %p126 = scmp.ne.s32.totalorder %s117, %s118
      %p127 = scmp.eq.s32.totalorder %s23, 0
      %p128 = por %p126, %p127
      %p129 = scmp.ne.s32.totalorder %s117, %s118
      %p130 = scmp.eq.s32.totalorder %s24, 1
      %p131 = por %p129, %p130
      %p133 = scmp.ne.s32.totalorder %s118, %s132
      %p134 = scmp.eq.s32.totalorder %s24, 0
      %p135 = por %p133, %p134
      %s137 = sadd.s32 %s136, 1
      %p140 = scmp.eq.s32.totalorder %s18, 1
      %p141 = scmp.ne.s32.totalorder %s136, %s138
      %p142 = scmp.eq.s32.totalorder %s18, 0
      %p143 = por %p141, %p142
      %p144 = scmp.ne.s32.totalorder %s136, %s138
      %p145 = scmp.eq.s32.totalorder %s23, 1
      %p146 = por %p144, %p145
      %p147 = scmp.ne.s32.totalorder %s138, %s139
      %p148 = scmp.eq.s32.totalorder %s23, 0
      %p149 = por %p147, %p148
      %p150 = scmp.ne.s32.totalorder %s138, %s139
      %p151 = scmp.eq.s32.totalorder %s24, 1
      %p152 = por %p150, %p151
      %p154 = scmp.ne.s32.totalorder %s139, %s153
      %p155 = scmp.eq.s32.totalorder %s24, 0
      %p156 = por %p154, %p155
      %s157 = ssub.s32 %s18, %s25
      %p158 = scmp.eq.s32.totalorder %s157, 0
      %s160 = sadd.s32 %s159, 1
      %s161 = scalar_select %p158, %s159, %s160
      %p164 = pneg %p158
      %p165 = scmp.eq.s32.totalorder %s18, 1
      %p166 = por %p164, %p165
      %p167 = scmp.ne.s32.totalorder %s159, %s162
      %p168 = scmp.eq.s32.totalorder %s18, 0
      %p169 = por %p167, %p168
      %p170 = scmp.ne.s32.totalorder %s159, %s162
      %p171 = scmp.eq.s32.totalorder %s23, 1
      %p172 = por %p170, %p171
      %p173 = scmp.ne.s32.totalorder %s162, %s163
      %p174 = scmp.eq.s32.totalorder %s23, 0
      %p175 = por %p173, %p174
      %p176 = scmp.ne.s32.totalorder %s162, %s163
      %p177 = scmp.eq.s32.totalorder %s24, 1
      %p178 = por %p176, %p177
      %p180 = scmp.ne.s32.totalorder %s163, %s179
      %p181 = scmp.eq.s32.totalorder %s24, 0
      %p182 = por %p180, %p181
      %p183 = scmp.le.s32.totalorder 1, %s18
      %p184 = scmp.lt.s32.totalorder %s18, 3
      %p185 = pnand %p183, %p184
      %p186 = pneg %p185
      // Predicated region
      $region9: #{tpu_custom_call.1} parent=5 // pred_check
        _
      $region10: #{tpu_custom_call.1} parent=5 // pred_check_branch
        %188 = sbr.rel (%p185) target = $region12
      $region11: #{tpu_custom_call.1} parent=5 // pred_region
        %s189 = ssub.s32 %s18, 1
        // Predicated region
        $region13: #{tpu_custom_call.1} parent=11 // pred_check
          %p190 = pneg %p65
        $region14: #{tpu_custom_call.1} parent=11 // pred_check_branch
          %192 = sbr.rel (%p190) target = $region16
        $region15: #{tpu_custom_call.1} parent=11 // pred_region
          _
        $region16: #{tpu_custom_call.1} parent=11 // pred_fallthru
          _
        // Predicated region
        $region17: #{tpu_custom_call.1} parent=11 // pred_check
          %p193 = pneg %p86
        $region18: #{tpu_custom_call.1} parent=11 // pred_check_branch
          %195 = sbr.rel (%p193) target = $region20
        $region19: #{tpu_custom_call.1} parent=11 // pred_region
          _
        $region20: #{tpu_custom_call.1} parent=11 // pred_fallthru
          _
        // Predicated region
        $region21: #{tpu_custom_call.1} parent=11 // pred_check
          %p196 = pneg %p107
        $region22: #{tpu_custom_call.1} parent=11 // pred_check_branch
          %198 = sbr.rel (%p196) target = $region24
        $region23: #{tpu_custom_call.1} parent=11 // pred_region
          _
        $region24: #{tpu_custom_call.1} parent=11 // pred_fallthru
          _
        // Predicated region
        $region25: #{tpu_custom_call.1} parent=11 // pred_check
          %p199 = pneg %p128
        $region26: #{tpu_custom_call.1} parent=11 // pred_check_branch
          %201 = sbr.rel (%p199) target = $region28
        $region27: #{tpu_custom_call.1} parent=11 // pred_region
          _
        $region28: #{tpu_custom_call.1} parent=11 // pred_fallthru
          _
        // Predicated region
        $region29: #{tpu_custom_call.1} parent=11 // pred_check
          %p202 = pneg %p149
        $region30: #{tpu_custom_call.1} parent=11 // pred_check_branch
          %204 = sbr.rel (%p202) target = $region32
        $region31: #{tpu_custom_call.1} parent=11 // pred_region
          _
        $region32: #{tpu_custom_call.1} parent=11 // pred_fallthru
          _
      $region12: #{tpu_custom_call.1} parent=5 // pred_fallthru
        _
      %p205 = scmp.lt.s32.totalorder %s18, 2
      // Predicated region
      $region33: #{tpu_custom_call.1} parent=5 // pred_check
        %p206 = pneg %p205
      $region34: #{tpu_custom_call.1} parent=5 // pred_check_branch
        %208 = sbr.rel (%p206) target = $region36
      $region35: #{tpu_custom_call.1} parent=5 // pred_region
        // Predicated region
        $region37: #{tpu_custom_call.1} parent=35 // pred_check
          %p209 = pneg %p38
        $region38: #{tpu_custom_call.1} parent=35 // pred_check_branch
          %211 = sbr.rel (%p209) target = $region40
        $region39: #{tpu_custom_call.1} parent=35 // pred_region
          %s212 = sand.u32 %s28, 1
          %s213 = scalar_lea.sflag [#allocation3], %s212
          %s214 = sand.u32 %s28, 1
          %s215 = smul.addr %s214, 160
          %s216 = scalar_lea.vmem [#allocation2], %s215
          %s217 = smul.u32 4, %s18
          %219 = vsyncadd %s213, 0
          %s220 = smul.addr %s217, 5
          %s221 = smul.addr %s220, 8
          %s222 = scalar_lea.hbm %s0, %s221
          %s223 = sshll.u32 %s222, 4
          %s224 = int_to_ptr.hbm [resolvable:$true] %s223
          %s225 = sshll.u32 %s216, 4
          %s226 = int_to_ptr.vmem [resolvable:$true] %s225
          %231 = dma.hbm_to_vmem [thread:$0]  %s224, 2560, %s226, %s213, 128, 128, 8
        $region40: #{tpu_custom_call.1} parent=35 // pred_fallthru
          _
      $region36: #{tpu_custom_call.1} parent=5 // pred_fallthru
        _
      %p232 = scmp.le.s32.totalorder 1, %s18
      %p233 = scmp.lt.s32.totalorder %s18, 3
      %p234 = pnand %p232, %p233
      %p235 = pneg %p234
      // Predicated region
      $region41: #{tpu_custom_call.1} parent=5 // pred_check
        _
      $region42: #{tpu_custom_call.1} parent=5 // pred_check_branch
        %237 = sbr.rel (%p234) target = $region44
      $region43: #{tpu_custom_call.1} parent=5 // pred_region
        %s238 = ssub.s32 %s18, 1
        %s239 = sand.u32 %s31, 1
        %s240 = scalar_lea.sflag [#allocation3], %s239
        %s241 = sand.u32 %s31, 1
        %s242 = smul.addr %s241, 160
        %s243 = scalar_lea.vmem [#allocation2], %s242
        // Predicated region
        $region45: #{tpu_custom_call.1} parent=43 // pred_check
          %p244 = pneg %p44
        $region46: #{tpu_custom_call.1} parent=43 // pred_check_branch
          %246 = sbr.rel (%p244) target = $region48
        $region47: #{tpu_custom_call.1} parent=43 // pred_region
          %248 = dma.done %s240, 2560
        $region48: #{tpu_custom_call.1} parent=43 // pred_fallthru
          _
        %s249 = sand.u32 %s31, 1
        %s250 = scalar_lea.sflag [#allocation3], %s249
        %s251 = sand.u32 %s31, 1
        %s252 = smul.addr %s251, 160
        %s253 = scalar_lea.vmem [#allocation2], %s252
        %p254 = pneg %p44
        %p255 = pneg %p41
        %p256 = pneg %p65
        %p257 = pneg %p62
        %p258 = pneg %p86
        %p259 = pneg %p83
        %p260 = pneg %p107
        %p261 = pneg %p104
        %p262 = pneg %p128
        %p263 = pneg %p125
        %p264 = pneg %p149
        %p265 = pneg %p146
        %p266 = pneg %p175
        %p267 = pneg %p172
        %s268 = sand.u32 %s162, 1
        %s269 = scalar_lea.sflag [#allocation4], %s268
        %s270 = sand.u32 %s162, 1
        %s271 = smul.addr %s270, 32
        %s272 = scalar_lea.vmem [#allocation5], %s271
        %s273 = smul.u32 4, %s23
        %s274 = smul.u32 4, %s23
        %v276 = vld [vmem:[%s243] sm:$0xff]
        %v277 = vld [vmem:[%s243 + $0x8] sm:$0xff]
        %v278 = vld [vmem:[%s243 + $0x10] sm:$0xff]
        %v279 = vld [vmem:[%s243 + $0x18] sm:$0xff]
        %v280 = vld [vmem:[%s243 + $0x20] sm:$0xff]
        %v281 = vld [vmem:[%s243 + $0x28] sm:$0xff]
        %v282 = vld [vmem:[%s243 + $0x30] sm:$0xff]
        %v283 = vld [vmem:[%s243 + $0x38] sm:$0xff]
        %v284 = vld [vmem:[%s243 + $0x40] sm:$0xff]
        %v285 = vld [vmem:[%s243 + $0x48] sm:$0xff]
        %v286 = vld [vmem:[%s243 + $0x50] sm:$0xff]
        %v287 = vld [vmem:[%s243 + $0x58] sm:$0xff]
        %v288 = vld [vmem:[%s243 + $0x60] sm:$0xff]
        %v289 = vld [vmem:[%s243 + $0x68] sm:$0xff]
        %v290 = vld [vmem:[%s243 + $0x70] sm:$0xff]
        %v291 = vld [vmem:[%s243 + $0x78] sm:$0xff]
        %v292 = vld [vmem:[%s243 + $0x80] sm:$0xff]
        %v293 = vld [vmem:[%s243 + $0x88] sm:$0xff]
        %v294 = vld [vmem:[%s243 + $0x90] sm:$0xff]
        %v295 = vld [vmem:[%s243 + $0x98] sm:$0xff]
        %v296 = vld [vmem:[%s1] sm:$0xff]
        %v297 = vadd.f32 %v276, %v296
        %v298 = vadd.f32 %v277, %v296
        %v299 = vadd.f32 %v278, %v296
        %v300 = vadd.f32 %v279, %v296
        %v301 = vadd.f32 %v280, %v296
        %v302 = vadd.f32 %v281, %v296
        %v303 = vadd.f32 %v282, %v296
        %v304 = vadd.f32 %v283, %v296
        %v305 = vadd.f32 %v284, %v296
        %v306 = vadd.f32 %v285, %v296
        %v307 = vadd.f32 %v286, %v296
        %v308 = vadd.f32 %v287, %v296
        %v309 = vadd.f32 %v288, %v296
        %v310 = vadd.f32 %v289, %v296
        %v311 = vadd.f32 %v290, %v296
        %v312 = vadd.f32 %v291, %v296
        %v313 = vadd.f32 %v292, %v296
        %v314 = vadd.f32 %v293, %v296
        %v315 = vadd.f32 %v294, %v296
        %v316 = vadd.f32 %v295, %v296
        %vm317 = vcmask 523264
        %v318 = vsel %vm317, %v297, -inf
        %v319 = vsel %vm317, %v298, -inf
        %v320 = vmax.f32 %v318, %v319
        %v321 = vsel %vm317, %v299, -inf
        %v322 = vmax.f32 %v320, %v321
        %v323 = vsel %vm317, %v300, -inf
        %v324 = vmax.f32 %v322, %v323
        %v325 = vsel %vm317, %v301, -inf
        %v326 = vmax.f32 %v324, %v325
        %v327 = vsel %vm317, %v302, -inf
        %v328 = vsel %vm317, %v303, -inf
        %v329 = vmax.f32 %v327, %v328
        %v330 = vsel %vm317, %v304, -inf
        %v331 = vmax.f32 %v329, %v330
        %v332 = vsel %vm317, %v305, -inf
        %v333 = vmax.f32 %v331, %v332
        %v334 = vsel %vm317, %v306, -inf
        %v335 = vmax.f32 %v333, %v334
        %v336 = vsel %vm317, %v307, -inf
        %v337 = vsel %vm317, %v308, -inf
        %v338 = vmax.f32 %v336, %v337
        %v339 = vsel %vm317, %v309, -inf
        %v340 = vmax.f32 %v338, %v339
        %v341 = vsel %vm317, %v310, -inf
        %v342 = vmax.f32 %v340, %v341
        %v343 = vsel %vm317, %v311, -inf
        %v344 = vmax.f32 %v342, %v343
        %v345 = vsel %vm317, %v312, -inf
        %v346 = vsel %vm317, %v313, -inf
        %v347 = vmax.f32 %v345, %v346
        %v348 = vsel %vm317, %v314, -inf
        %v349 = vmax.f32 %v347, %v348
        %v350 = vsel %vm317, %v315, -inf
        %v351 = vmax.f32 %v349, %v350
        %v352 = vsel %vm317, %v316, -inf
        %v353 = vmax.f32 %v351, %v352
        %v354 = vlaneseq
        %v355 = vshrl.u32 %v354, 7
        %v356 = vadd.s32 %v355, 8
        %v357 = vadd.s32 %v355, 16
        %v358 = vadd.s32 %v355, 24
        %vm359 = vcmp.lt.s32.totalorder %v355, 0
        %v360 = vsub.s32 0, %v355
        %v361 = vsel %vm359, %v360, %v355
        %v362 = vshrl.u32 %v361, 3
        %v363 = vand.u32 %v361, 7
        %v364 = vsub.s32 0, %v363
        %v365 = vsel %vm359, %v364, %v363
        %vm366 = vcmp.lt.s32.totalorder %v356, 0
        %v367 = vsub.s32 0, %v356
        %v368 = vsel %vm366, %v367, %v356
        %v369 = vshrl.u32 %v368, 3
        %v370 = vand.u32 %v368, 7
        %v371 = vsub.s32 0, %v370
        %v372 = vsel %vm366, %v371, %v370
        %vm373 = vcmp.lt.s32.totalorder %v357, 0
        %v374 = vsub.s32 0, %v357
        %v375 = vsel %vm373, %v374, %v357
        %v376 = vshrl.u32 %v375, 3
        %v377 = vand.u32 %v375, 7
        %v378 = vsub.s32 0, %v377
        %v379 = vsel %vm373, %v378, %v377
        %vm380 = vcmp.lt.s32.totalorder %v358, 0
        %v381 = vsub.s32 0, %v358
        %v382 = vsel %vm380, %v381, %v358
        %v383 = vshrl.u32 %v382, 3
        %v384 = vand.u32 %v382, 7
        %v385 = vsub.s32 0, %v384
        %v386 = vsel %vm380, %v385, %v384
        %vm387 = vcmp.ne.s32.totalorder %v365, 0
        %vm388 = vcmp.ne.s32.totalorder %v372, 0
        %vm389 = vcmp.ne.s32.totalorder %v379, 0
        %vm390 = vcmp.ne.s32.totalorder %v386, 0
        %vm391 = vcmp.lt.s32.totalorder %v365, 0
        %vm392 = vcmp.lt.s32.totalorder %v372, 0
        %vm393 = vcmp.lt.s32.totalorder %v379, 0
        %vm394 = vcmp.lt.s32.totalorder %v386, 0
        %vm395 = vmand %vm391, %vm387
        %vm396 = vmand %vm392, %vm388
        %vm397 = vmand %vm393, %vm389
        %vm398 = vmand %vm394, %vm390
        %v399 = vadd.s32 %v365, 8
        %v400 = vadd.s32 %v372, 8
        %v401 = vadd.s32 %v379, 8
        %v402 = vadd.s32 %v386, 8
        %v403 = vsel %vm395, %v399, %v365
        %v404 = vsel %vm396, %v400, %v372
        %v405 = vsel %vm397, %v401, %v379
        %v406 = vsel %vm398, %v402, %v386
        %vm407 = vcmp.eq.s32.totalorder %v403, 0
        %vm408 = vcmp.eq.s32.totalorder %v404, 0
        %vm409 = vcmp.eq.s32.totalorder %v405, 0
        %vm410 = vcmp.eq.s32.totalorder %v406, 0
        %v411 = vrot.slane %v326, 7
        %v412 = vrot.slane %v335, 7
        %v413 = vrot.slane %v344, 7
        %v414 = vrot.slane %v353, 7
        %vm415 = vcmp.lt.s32.totalorder %v355, 1
        %v416 = vsel %vm415, %v413, %v414
        %v417 = vsel %vm415, %v412, %v413
        %v418 = vsel %vm415, %v411, %v412
        %v419 = vsel %vm415, %v414, %v411
        %v420 = vsel %vm407, 0.0, %v419
        %v421 = vsel %vm408, 0.0, %v418
        %v422 = vsel %vm409, 0.0, %v417
        %v423 = vsel %vm410, 0.0, %v416
        %vm424 = vcmp.eq.s32.totalorder %v403, 7
        %vm425 = vcmp.eq.s32.totalorder %v404, 7
        %vm426 = vcmp.eq.s32.totalorder %v405, 7
        %vm427 = vcmp.eq.s32.totalorder %v406, 7
        %v428 = vrot.slane %v326, 1
        %v429 = vrot.slane %v335, 1
        %v430 = vrot.slane %v344, 1
        %v431 = vrot.slane %v353, 1
        %vm432 = vcmp.lt.s32.totalorder %v355, 7
        %v433 = vsel %vm432, %v430, %v431
        %v434 = vsel %vm432, %v429, %v430
        %v435 = vsel %vm432, %v428, %v429
        %v436 = vsel %vm432, %v431, %v428
        %v437 = vsel %vm424, 0.0, %v435
        %v438 = vsel %vm425, 0.0, %v434
        %v439 = vsel %vm426, 0.0, %v433
        %v440 = vsel %vm427, 0.0, %v436
        %445 = vrot.lane.b32.xlu0 %v326, 64
        %v446 = vpop.permute.xlu0 %445
        %447 = vrot.lane.b32.xlu0 %v335, 64
        %v448 = vpop.permute.xlu0 %447
        %449 = vrot.lane.b32.xlu0 %v344, 64
        %v450 = vpop.permute.xlu0 %449
        %451 = vrot.lane.b32.xlu0 %v353, 64
        %v452 = vpop.permute.xlu0 %451
        %v457 = vsel %vm317, %v420, %v446
        %v458 = vsel %vm317, %v421, %v448
        %v459 = vsel %vm317, %v422, %v450
        %v460 = vsel %vm317, %v423, %v452
        %v461 = vpack.c.bf16 %v458, %v457
        %v462 = vpack.c.bf16 %v438, %v437
        %v463 = vpack.c.bf16 %v460, %v459
        %v464 = vpack.c.bf16 %v440, %v439
        %v465 = vld [vmem:[%s2] sm:$0xf]
        %v466 = vld [vmem:[%s2 + $0x4] sm:$0xf]
        %v467 = vld [vmem:[%s2 + $0x8] sm:$0xf]
        %v468 = vld [vmem:[%s2 + $0xc] sm:$0xf]
        %v469 = vld [vmem:[%s2 + $0x10] sm:$0xf]
        %v470 = vld [vmem:[%s2 + $0x14] sm:$0xf]
        %v471 = vld [vmem:[%s2 + $0x18] sm:$0xf]
        %v472 = vld [vmem:[%s2 + $0x1c] sm:$0xf]
        %v473 = vld [vmem:[%s2 + $0x20] sm:$0xf]
        %v474 = vld [vmem:[%s2 + $0x24] sm:$0xf]
        %v475 = vld [vmem:[%s2 + $0x28] sm:$0xf]
        %v476 = vld [vmem:[%s2 + $0x2c] sm:$0xf]
        %v477 = vld [vmem:[%s2 + $0x30] sm:$0xf]
        %v478 = vld [vmem:[%s2 + $0x34] sm:$0xf]
        %v479 = vld [vmem:[%s2 + $0x38] sm:$0xf]
        %v480 = vld [vmem:[%s2 + $0x3c] sm:$0xf]
        %v481 = vld [vmem:[%s2 + $0x40] sm:$0xf]
        %v482 = vld [vmem:[%s2 + $0x44] sm:$0xf]
        %v483 = vld [vmem:[%s2 + $0x48] sm:$0xf]
        %v484 = vld [vmem:[%s2 + $0x4c] sm:$0xf]
        %v485 = vld [vmem:[%s2 + $0x50] sm:$0xf]
        %v486 = vld [vmem:[%s2 + $0x54] sm:$0xf]
        %v487 = vld [vmem:[%s2 + $0x58] sm:$0xf]
        %v488 = vld [vmem:[%s2 + $0x5c] sm:$0xf]
        %v489 = vld [vmem:[%s3] sm:$0x1]
        %v491 = vperm.slane %v489, 0
        %v517 = vunpack.c.l.b16 %v465
        %v518 = vunpack.c.l.b16 %v466
        %v519 = vunpack.c.l.b16 %v467
        %v520 = vunpack.c.l.b16 %v468
        %v521 = vunpack.c.l.b16 %v469
        %v522 = vunpack.c.l.b16 %v470
        %v523 = vunpack.c.l.b16 %v471
        %v524 = vunpack.c.l.b16 %v472
        %v525 = vunpack.c.l.b16 %v473
        %v526 = vunpack.c.l.b16 %v474
        %v527 = vunpack.c.l.b16 %v475
        %v528 = vunpack.c.l.b16 %v476
        %v529 = vunpack.c.l.b16 %v477
        %v530 = vunpack.c.l.b16 %v478
        %v531 = vunpack.c.l.b16 %v479
        %v532 = vunpack.c.l.b16 %v480
        %v533 = vunpack.c.l.b16 %v481
        %v534 = vunpack.c.l.b16 %v482
        %v535 = vunpack.c.l.b16 %v483
        %v536 = vunpack.c.l.b16 %v484
        %v537 = vunpack.c.l.b16 %v485
        %v538 = vunpack.c.l.b16 %v486
        %v539 = vunpack.c.l.b16 %v487
        %v540 = vunpack.c.l.b16 %v488
        %v541 = vpack.c.b16 %v518, %v517
        %v542 = vpack.c.b16 %v520, %v519
        %v543 = vpack.c.b16 %v522, %v521
        %v544 = vpack.c.b16 %v524, %v523
        %v545 = vpack.c.b16 %v526, %v525
        %v546 = vpack.c.b16 %v528, %v527
        %v547 = vpack.c.b16 %v530, %v529
        %v548 = vpack.c.b16 %v532, %v531
        %v549 = vpack.c.b16 %v534, %v533
        %v550 = vpack.c.b16 %v536, %v535
        %v551 = vpack.c.b16 %v538, %v537
        %v552 = vpack.c.b16 %v540, %v539
        %v566 = vsel %vm317, %v462, 0
        %v569 = vsel %vm317, %v464, 0
        %571 = vmatpush.bf16.msra.mxu0 %v548
        %572 = vmatpush.bf16.msra.mxu0 %v547
        %573 = vmatpush.bf16.msra.mxu0 %v546
        %574 = vmatpush.bf16.msra.mxu0 %v545
        %575 = vmatpush.bf16.msra.mxu0 %v544
        %576 = vmatpush.bf16.msra.mxu0 %v543
        %577 = vmatpush.bf16.msra.mxu0 %v542
        %578 = vmatpush.bf16.msra.mxu0 %v541
        %579 = vmatmul.bf16.gmra.mxu0 %v461
        %v580 = vpop.f32.mrf.mxu0
        %v581 = vadd.f32 %v491, %v580
        %v582 = vpop.f32.mrf.mxu0
        %v583 = vadd.f32 %v491, %v582
        %584 = vmatmul.bf16.gmra.mxu0 %v463
        %v585 = vpop.f32.mrf.mxu0
        %v586 = vadd.f32 %v491, %v585
        %v587 = vpop.f32.mrf.mxu0
        %v588 = vadd.f32 %v491, %v587
        %589 = vdwg.mxu0
        %590 = vmatpush.bf16.msra.mxu0 0
        %591 = vmatpush.bf16.msra.mxu0 0
        %592 = vmatpush.bf16.msra.mxu0 0
        %593 = vmatpush.bf16.msra.mxu0 0
        %594 = vmatpush.bf16.msra.mxu0 %v552
        %595 = vmatpush.bf16.msra.mxu0 %v551
        %596 = vmatpush.bf16.msra.mxu0 %v550
        %597 = vmatpush.bf16.msra.mxu0 %v549
        %598 = vmatmul.bf16.gmra.mxu0 %v566
        %v599 = vpop.f32.mrf.mxu0
        %v600 = vadd.f32 %v581, %v599
        %v601 = vpop.f32.mrf.mxu0
        %v602 = vadd.f32 %v583, %v601
        %603 = vmatmul.bf16.gmra.mxu0 %v569
        %v604 = vpop.f32.mrf.mxu0
        %v605 = vadd.f32 %v586, %v604
        %v606 = vpop.f32.mrf.mxu0
        %v607 = vadd.f32 %v588, %v606
        %608 = vdwg.mxu0
        %v609 = vmax.f32 %v600, 0.0
        %v610 = vmax.f32 %v602, 0.0
        %v611 = vmax.f32 %v605, 0.0
        %v612 = vmax.f32 %v607, 0.0
        %v613 = vpack.c.bf16 %v610, %v609
        %v614 = vpack.c.bf16 %v612, %v611
        %v615 = vld [vmem:[%s4] sm:$0xf]
        %v616 = vld [vmem:[%s4 + $0x4] sm:$0xf]
        %v617 = vld [vmem:[%s4 + $0x8] sm:$0xf]
        %v618 = vld [vmem:[%s4 + $0xc] sm:$0xf]
        %v619 = vld [vmem:[%s4 + $0x10] sm:$0xf]
        %v620 = vld [vmem:[%s4 + $0x14] sm:$0xf]
        %v621 = vld [vmem:[%s4 + $0x18] sm:$0xf]
        %v622 = vld [vmem:[%s4 + $0x1c] sm:$0xf]
        %v623 = vld [vmem:[%s5] sm:$0x1]
        %v625 = vperm.slane %v623, 0
        %v635 = vunpack.c.l.b16 %v615
        %v636 = vunpack.c.l.b16 %v616
        %v637 = vunpack.c.l.b16 %v617
        %v638 = vunpack.c.l.b16 %v618
        %v639 = vunpack.c.l.b16 %v619
        %v640 = vunpack.c.l.b16 %v620
        %v641 = vunpack.c.l.b16 %v621
        %v642 = vunpack.c.l.b16 %v622
        %v643 = vpack.c.b16 %v636, %v635
        %v644 = vpack.c.b16 %v638, %v637
        %v645 = vpack.c.b16 %v640, %v639
        %v646 = vpack.c.b16 %v642, %v641
        %v652 = vsel %vm317, %v613, 0
        %v655 = vsel %vm317, %v614, 0
        %657 = vmatpush.bf16.msra.mxu0 0
        %658 = vmatpush.bf16.msra.mxu0 0
        %659 = vmatpush.bf16.msra.mxu0 0
        %660 = vmatpush.bf16.msra.mxu0 0
        %661 = vmatpush.bf16.msra.mxu0 %v646
        %662 = vmatpush.bf16.msra.mxu0 %v645
        %663 = vmatpush.bf16.msra.mxu0 %v644
        %664 = vmatpush.bf16.msra.mxu0 %v643
        %665 = vmatmul.bf16.gmra.mxu0 %v652
        %v666 = vpop.f32.mrf.mxu0
        %v667 = vadd.f32 %v625, %v666
        %v668 = vpop.f32.mrf.mxu0
        %v669 = vadd.f32 %v625, %v668
        %670 = vmatmul.bf16.gmra.mxu0 %v655
        %v671 = vpop.f32.mrf.mxu0
        %v672 = vadd.f32 %v625, %v671
        %v673 = vpop.f32.mrf.mxu0
        %v674 = vadd.f32 %v625, %v673
        %675 = vdwg.mxu0
        %v676 = vmax.f32 %v667, 0.0
        %v677 = vmax.f32 %v669, 0.0
        %v678 = vmax.f32 %v672, 0.0
        %v679 = vmax.f32 %v674, 0.0
        %680 = vst [vmem:[%s272] sm:$0xff] %v676
        %681 = vst [vmem:[%s272 + $0x8] sm:$0xff] %v677
        %682 = vst [vmem:[%s272 + $0x10] sm:$0xff] %v678
        %683 = vst [vmem:[%s272 + $0x18] sm:$0xff] %v679
        %s684 = sand.u32 %s162, 1
        %s685 = scalar_lea.sflag [#allocation4], %s684
        %s686 = sand.u32 %s162, 1
        %s687 = smul.addr %s686, 32
        %s688 = scalar_lea.vmem [#allocation5], %s687
        // Predicated region
        $region49: #{tpu_custom_call.1} parent=43 // pred_check
          %p689 = pneg %p172
        $region50: #{tpu_custom_call.1} parent=43 // pred_check_branch
          %691 = sbr.rel (%p689) target = $region52
        $region51: #{tpu_custom_call.1} parent=43 // pred_region
          %s692 = smul.u32 4, %s23
          %694 = vsyncadd %s685, 0
          %s695 = smul.addr %s692, 8
          %s696 = scalar_lea.hbm %s6, %s695
          %s697 = sshll.u32 %s688, 4
          %s698 = int_to_ptr.vmem [resolvable:$true] %s697
          %s699 = sshll.u32 %s696, 4
          %s700 = int_to_ptr.hbm [resolvable:$true] %s699
          %705 = dma.vmem_to_hbm [thread:$0]  %s698, 512, %s700, %s685, 128, 128, 8
        $region52: #{tpu_custom_call.1} parent=43 // pred_fallthru
          _
      $region44: #{tpu_custom_call.1} parent=5 // pred_fallthru
        _
      %p706 = scmp.le.s32.totalorder 2, %s18
      // Predicated region
      $region53: #{tpu_custom_call.1} parent=5 // pred_check
        %p707 = pneg %p706
      $region54: #{tpu_custom_call.1} parent=5 // pred_check_branch
        %709 = sbr.rel (%p707) target = $region56
      $region55: #{tpu_custom_call.1} parent=5 // pred_region
        %s710 = ssub.s32 %s18, 2
        // Predicated region
        $region57: #{tpu_custom_call.1} parent=55 // pred_check
          %p711 = pneg %p178
        $region58: #{tpu_custom_call.1} parent=55 // pred_check_branch
          %713 = sbr.rel (%p711) target = $region60
        $region59: #{tpu_custom_call.1} parent=55 // pred_region
          %s714 = sand.u32 %s163, 1
          %s715 = scalar_lea.sflag [#allocation4], %s714
          %s716 = sand.u32 %s163, 1
          %s717 = smul.addr %s716, 32
          %s718 = scalar_lea.vmem [#allocation5], %s717
          %720 = dma.done %s715, 512
        $region60: #{tpu_custom_call.1} parent=55 // pred_fallthru
          _
      $region56: #{tpu_custom_call.1} parent=5 // pred_fallthru
        _
    $region6: #{tpu_custom_call.1} parent=1 // loop_footer
      %s22 = sadd.s32 1, %s18
    $region7: #{tpu_custom_call.1} parent=1 // loop_footer_branch
      %17 = sbr.rel target = $region3
    $region8: #{tpu_custom_call.1} parent=1 // loop_exit
      _
    %721 = vsyncpa [#allocation3], 1
    %s722 = scalar_lea.sflag [#allocation3], 1
    %723 = vsyncpa %s722, 1
    %724 = vsyncpa [#allocation4], 1
    %s725 = scalar_lea.sflag [#allocation4], 1
    %726 = vsyncpa %s725, 1

</llo_original>
